<compile_context>
chip_gen: v5e
topology: v5e:2x2
jax: 0.10.0
libtpu: 0.0.40
codegen_flags: <defaults>
</compile_context>

<pallas_src>
import jax
import jax.numpy as jnp
from jax.experimental import pallas as pl
from jax.experimental.pallas import tpu as pltpu


def _gather_kernel(idx_ref, table_ref, out_ref):
    # idx_ref:   (TB, 1) int32  in VMEM (one batch tile of indices)
    # table_ref: (N, D)  float  in VMEM (resident; constant block index)
    # out_ref:   (TB, D) float  in VMEM (one batch tile of embeddings)
    n = table_ref.shape[0]

    # torch.nn.Embedding raises on out-of-range indices; TPU VMEM reads have
    # no bounds check, so clamp defensively instead (documented divergence).
    idx = jnp.clip(idx_ref[...], 0, n - 1)  # (TB, 1)

    table = table_ref[...]  # (N, D) — loaded once per tile

    # Vectorized gather: start from row 0, then N-1 broadcast-compare selects.
    # (TB, 1) cond broadcast against (1, D) row -> (TB, D); pure VALU work,
    # no dynamic-address sublane loads, finished by one full-block store.
    acc = jnp.broadcast_to(table[0:1, :], out_ref.shape).astype(out_ref.dtype)
    for r in range(1, n):  # N is small (8); static unroll is fine for regalloc
        acc = jnp.where(idx == r, table[r : r + 1, :], acc)

    out_ref[...] = acc


def emotion_embedding(emotion_class, embedding_table, *, max_batch_tile=512):
    """emotion_class: int (B,), embedding_table: float (N, D) -> (B, D)."""
    b = emotion_class.shape[0]
    n, d = embedding_table.shape
    itemsize = jnp.dtype(embedding_table.dtype).itemsize

    idx = emotion_class.astype(jnp.int32).reshape(b, 1)

    if b <= max_batch_tile:
        # Small batch: one full-array block -> no padding, no output slice,
        # grid of a single step.
        batch_tile = b
        b_padded = b
    else:
        # Large batch: 512-row tiles amortize per-grid-step overhead; the
        # padded tail indices gather row 0 (after clip) and are sliced off.
        batch_tile = max_batch_tile
        b_padded = pl.cdiv(b, batch_tile) * batch_tile
        if b_padded != b:
            idx = jnp.pad(idx, ((0, b_padded - b), (0, 0)))

    grid = (b_padded // batch_tile,)

    table_spec_kwargs = {}
    if n * d * itemsize > (4 << 20):
        # The table block index never changes; single-buffering halves its
        # VMEM footprint at zero perf cost (matters most on v7x's 64 MiB).
        table_spec_kwargs = dict(pipeline_mode=pl.Buffered(1))

    out = pl.pallas_call(
        _gather_kernel,
        out_shape=jax.ShapeDtypeStruct((b_padded, d), embedding_table.dtype),
        grid=grid,
        in_specs=[
            # Per-tile indices (vector form, needed for broadcast-compare).
            pl.BlockSpec((batch_tile, 1), lambda i: (i, 0)),
            # Table stays resident: constant block index across the grid, so
            # it is DMA'd once and reused by every batch tile.
            pl.BlockSpec((n, d), lambda i: (0, 0), **table_spec_kwargs),
        ],
        out_specs=pl.BlockSpec((batch_tile, d), lambda i: (i, 0)),
        compiler_params=pltpu.CompilerParams(
            # Only ask for cross-TC sharding when there is real work to split;
            # a 1-step grid would just duplicate the table DMA on v7x.
            dimension_semantics=(("parallel",) if grid[0] >= 2 else ("arbitrary",)),
        ),
        cost_estimate=pl.CostEstimate(
            flops=0,
            transcendentals=0,
            bytes_accessed=(n * d + b_padded * d) * itemsize + b_padded * 4,
        ),
    )(idx, embedding_table)

    return out[:b] if b_padded != b else out


if __name__ == "__main__":
    num_emotions = 8
    embedding_dim = 32
    batch = 8

    key = jax.random.PRNGKey(0)
    k_table, k_idx = jax.random.split(key)

    # nn.Embedding default init: N(0, 1)
    embedding_table = jax.random.normal(
        k_table, (num_emotions, embedding_dim), dtype=jnp.float32
    )
    emotion_class = jax.random.randint(
        k_idx, (batch,), minval=0, maxval=num_emotions, dtype=jnp.int32
    )

    out = emotion_embedding(emotion_class, embedding_table)
    out = jax.block_until_ready(out)

    # Reference check: plain JAX gather (== torch nn.Embedding forward).
    ref = embedding_table[emotion_class]
    assert out.shape == (batch, embedding_dim)
    assert jnp.allclose(out, ref, atol=1e-6), "mismatch vs reference gather"

    print("KERNEL_OK")
</pallas_src>

<mosaic_0001>
module attributes {stable_mosaic.version = 11 : i64} {
  func.func @_gather_kernel(%arg0: i32, %arg1: memref<8x1xi32, #tpu.memory_space<vmem>>, %arg2: memref<8x32xf32, #tpu.memory_space<vmem>>, %arg3: memref<8x32xf32, #tpu.memory_space<vmem>>) attributes {dimension_semantics = [#tpu.dimension_semantics<arbitrary>], iteration_bounds = array<i64: 1>, scalar_prefetch = 0 : i64, scratch_operands = 0 : i64, tpu.core_type = #tpu.core_type<tc>, window_params = [{transform_indices = @transform_0, window_bounds = array<i64: 8, 1>}, {pipeline_mode = #tpu.pipeline_mode<synchronous>, transform_indices = @transform_1, window_bounds = array<i64: 8, 32>}, {transform_indices = @transform_2, window_bounds = array<i64: 8, 32>}]} {
    %c0 = arith.constant 0 : index
    %c0_0 = arith.constant 0 : index
    %0 = vector.load %arg1[%c0, %c0_0] : memref<8x1xi32, #tpu.memory_space<vmem>>, vector<8x1xi32>
    %c0_i32 = arith.constant 0 : i32
    %c7_i32 = arith.constant 7 : i32
    %1 = vector.broadcast %c0_i32 : i32 to vector<8x1xi32>
    %2 = arith.maxsi %1, %0 : vector<8x1xi32>
    %3 = vector.broadcast %c7_i32 : i32 to vector<8x1xi32>
    %4 = arith.minsi %3, %2 : vector<8x1xi32>
    %c0_1 = arith.constant 0 : index
    %c0_2 = arith.constant 0 : index
    %5 = vector.load %arg2[%c0_1, %c0_2] : memref<8x32xf32, #tpu.memory_space<vmem>>, vector<8x32xf32>
    %6 = vector.extract_strided_slice %5 {offsets = [0, 0], sizes = [1, 32], strides = [1, 1]} : vector<8x32xf32> to vector<1x32xf32>
    %7 = vector.shape_cast %6 : vector<1x32xf32> to vector<1x32xf32>
    %8 = vector.broadcast %7 : vector<1x32xf32> to vector<8x32xf32>
    %c1_i32 = arith.constant 1 : i32
    %9 = vector.broadcast %c1_i32 : i32 to vector<8x1xi32>
    %10 = arith.cmpi eq, %4, %9 : vector<8x1xi32>
    %11 = vector.extract_strided_slice %5 {offsets = [1, 0], sizes = [1, 32], strides = [1, 1]} : vector<8x32xf32> to vector<1x32xf32>
    %12 = vector.shape_cast %10 : vector<8x1xi1> to vector<8x1xi1>
    %13 = vector.broadcast %12 : vector<8x1xi1> to vector<8x32xi1>
    %14 = vector.shape_cast %11 : vector<1x32xf32> to vector<1x32xf32>
    %15 = vector.broadcast %14 : vector<1x32xf32> to vector<8x32xf32>
    %16 = arith.select %13, %15, %8 : vector<8x32xi1>, vector<8x32xf32>
    %c2_i32 = arith.constant 2 : i32
    %17 = vector.broadcast %c2_i32 : i32 to vector<8x1xi32>
    %18 = arith.cmpi eq, %4, %17 : vector<8x1xi32>
    %19 = vector.extract_strided_slice %5 {offsets = [2, 0], sizes = [1, 32], strides = [1, 1]} : vector<8x32xf32> to vector<1x32xf32>
    %20 = vector.shape_cast %18 : vector<8x1xi1> to vector<8x1xi1>
    %21 = vector.broadcast %20 : vector<8x1xi1> to vector<8x32xi1>
    %22 = vector.shape_cast %19 : vector<1x32xf32> to vector<1x32xf32>
    %23 = vector.broadcast %22 : vector<1x32xf32> to vector<8x32xf32>
    %24 = arith.select %21, %23, %16 : vector<8x32xi1>, vector<8x32xf32>
    %c3_i32 = arith.constant 3 : i32
    %25 = vector.broadcast %c3_i32 : i32 to vector<8x1xi32>
    %26 = arith.cmpi eq, %4, %25 : vector<8x1xi32>
    %27 = vector.extract_strided_slice %5 {offsets = [3, 0], sizes = [1, 32], strides = [1, 1]} : vector<8x32xf32> to vector<1x32xf32>
    %28 = vector.shape_cast %26 : vector<8x1xi1> to vector<8x1xi1>
    %29 = vector.broadcast %28 : vector<8x1xi1> to vector<8x32xi1>
    %30 = vector.shape_cast %27 : vector<1x32xf32> to vector<1x32xf32>
    %31 = vector.broadcast %30 : vector<1x32xf32> to vector<8x32xf32>
    %32 = arith.select %29, %31, %24 : vector<8x32xi1>, vector<8x32xf32>
    %c4_i32 = arith.constant 4 : i32
    %33 = vector.broadcast %c4_i32 : i32 to vector<8x1xi32>
    %34 = arith.cmpi eq, %4, %33 : vector<8x1xi32>
    %35 = vector.extract_strided_slice %5 {offsets = [4, 0], sizes = [1, 32], strides = [1, 1]} : vector<8x32xf32> to vector<1x32xf32>
    %36 = vector.shape_cast %34 : vector<8x1xi1> to vector<8x1xi1>
    %37 = vector.broadcast %36 : vector<8x1xi1> to vector<8x32xi1>
    %38 = vector.shape_cast %35 : vector<1x32xf32> to vector<1x32xf32>
    %39 = vector.broadcast %38 : vector<1x32xf32> to vector<8x32xf32>
    %40 = arith.select %37, %39, %32 : vector<8x32xi1>, vector<8x32xf32>
    %c5_i32 = arith.constant 5 : i32
    %41 = vector.broadcast %c5_i32 : i32 to vector<8x1xi32>
    %42 = arith.cmpi eq, %4, %41 : vector<8x1xi32>
    %43 = vector.extract_strided_slice %5 {offsets = [5, 0], sizes = [1, 32], strides = [1, 1]} : vector<8x32xf32> to vector<1x32xf32>
    %44 = vector.shape_cast %42 : vector<8x1xi1> to vector<8x1xi1>
    %45 = vector.broadcast %44 : vector<8x1xi1> to vector<8x32xi1>
    %46 = vector.shape_cast %43 : vector<1x32xf32> to vector<1x32xf32>
    %47 = vector.broadcast %46 : vector<1x32xf32> to vector<8x32xf32>
    %48 = arith.select %45, %47, %40 : vector<8x32xi1>, vector<8x32xf32>
    %c6_i32 = arith.constant 6 : i32
    %49 = vector.broadcast %c6_i32 : i32 to vector<8x1xi32>
    %50 = arith.cmpi eq, %4, %49 : vector<8x1xi32>
    %51 = vector.extract_strided_slice %5 {offsets = [6, 0], sizes = [1, 32], strides = [1, 1]} : vector<8x32xf32> to vector<1x32xf32>
    %52 = vector.shape_cast %50 : vector<8x1xi1> to vector<8x1xi1>
    %53 = vector.broadcast %52 : vector<8x1xi1> to vector<8x32xi1>
    %54 = vector.shape_cast %51 : vector<1x32xf32> to vector<1x32xf32>
    %55 = vector.broadcast %54 : vector<1x32xf32> to vector<8x32xf32>
    %56 = arith.select %53, %55, %48 : vector<8x32xi1>, vector<8x32xf32>
    %c7_i32_3 = arith.constant 7 : i32
    %57 = vector.broadcast %c7_i32_3 : i32 to vector<8x1xi32>
    %58 = arith.cmpi eq, %4, %57 : vector<8x1xi32>
    %59 = vector.extract_strided_slice %5 {offsets = [7, 0], sizes = [1, 32], strides = [1, 1]} : vector<8x32xf32> to vector<1x32xf32>
    %60 = vector.shape_cast %58 : vector<8x1xi1> to vector<8x1xi1>
    %61 = vector.broadcast %60 : vector<8x1xi1> to vector<8x32xi1>
    %62 = vector.shape_cast %59 : vector<1x32xf32> to vector<1x32xf32>
    %63 = vector.broadcast %62 : vector<1x32xf32> to vector<8x32xf32>
    %64 = arith.select %61, %63, %56 : vector<8x32xi1>, vector<8x32xf32>
    %c0_4 = arith.constant 0 : index
    %c0_5 = arith.constant 0 : index
    %65 = vector.load %arg3[%c0_4, %c0_5] : memref<8x32xf32, #tpu.memory_space<vmem>>, vector<8x32xf32>
    tpu.vector_store %arg3[%c0_4, %c0_5], %64 {strides = array<i32>} : memref<8x32xf32, #tpu.memory_space<vmem>>, vector<8x32xf32>,
    return
  }
  func.func @transform_0(%arg0: i32) -> (i32, i32) {
    %c0_i32 = arith.constant 0 : i32
    %c0_i32_0 = arith.constant 0 : i32
    return %arg0, %c0_i32 : i32, i32
  }
  func.func @transform_1(%arg0: i32) -> (i32, i32) {
    %c0_i32 = arith.constant 0 : i32
    %c0_i32_0 = arith.constant 0 : i32
    %c0_i32_1 = arith.constant 0 : i32
    return %c0_i32, %c0_i32_0 : i32, i32
  }
  func.func @transform_2(%arg0: i32) -> (i32, i32) {
    %c0_i32 = arith.constant 0 : i32
    %c0_i32_0 = arith.constant 0 : i32
    return %arg0, %c0_i32 : i32, i32
  }
}

</mosaic_0001>

<llo_original>
// kernel: tpu_custom_call.1
$region0: #{tpu_custom_call.1}
  #allocation0 [shape = 'u32[]', space=smem, size = 0x4, offset = 0x4, fixed_abs, tag = 'smem constant byte address 0x4 - core index']
  #allocation1 [shape = 'u32[72,128]{1,0:T(1,128)}', space=vmem, size = 0x9000, scoped, tag = 'internal scratch']
  %s0 = inlined_call_operand.vmem [shape: s32[8,1], index: 0, kind: input, shape index: {}]
  %s1 = inlined_call_operand.vmem [shape: f32[8,32], index: 1, kind: input, shape index: {}]
  %s2 = inlined_call_operand.hbm [shape: f32[8,32], index: 2, kind: output, shape index: {}]
  %s3 = sld [smem:[#allocation0]]
  $region18: #{tpu_custom_call.1} parent=0
    _
  %s5 = ssub.s32 1, %s3
  %s6 = scalar_select 0, %s5, %s3
  $region1: #{tpu_custom_call.1} parent=0
    #allocation2 [shape = 'u8[4096]{0}', space=vmem, size = 0x1000, scoped, tag = 'output window, operand 0, single buffered']
    #allocation3 [shape = 's32[1]{0}', space=sflag, size = 0x4, scoped, tag = 'scoped memory for tpu_custom_call.1']
    %7 = vsyncpa [#allocation3], 0
    // Predicated region
    $region2: #{tpu_custom_call.1} parent=1 // pred_check
      _
    $region3: #{tpu_custom_call.1} parent=1 // pred_check_branch
      %9 = sbr.rel (0) target = $region5
    $region4: #{tpu_custom_call.1} parent=1 // pred_region
      _
    $region5: #{tpu_custom_call.1} parent=1 // pred_fallthru
      _
    // Predicated region
    $region6: #{tpu_custom_call.1} parent=1 // pred_check
      _
    $region7: #{tpu_custom_call.1} parent=1 // pred_check_branch
      %11 = sbr.rel (0) target = $region9
    $region8: #{tpu_custom_call.1} parent=1 // pred_region
      _
    $region9: #{tpu_custom_call.1} parent=1 // pred_fallthru
      _
    %v12 = vld [vmem:[%s0] sm:$0xff]
    %vm13 = vcmp.gt.s32.totalorder %v12, 0
    %v14 = vsel %vm13, %v12, 0
    %vm15 = vcmp.lt.s32.totalorder %v14, 7
    %v16 = vsel %vm15, %v14, 7
    %v17 = vld [vmem:[%s1] sm:$0xff]
    %v18 = vperm.slane %v17, 0
    %vm19 = vcmp.eq.s32.totalorder %v16, 1
    %v20 = vsel %vm19, 1, 0
    %21 = vset.pattern.permute.xlu0 0
    %22 = vperm.xlu0 %21, %v20
    %v23 = vpop.permute.xlu0 %22
    %vm24 = vcmp.eq.s32.totalorder %v23, 1
    %v25 = vperm.slane %v17, 1
    %v26 = vsel %vm24, %v25, %v18
    %vm27 = vcmp.eq.s32.totalorder %v16, 2
    %v28 = vsel %vm27, 1, 0
    %29 = vset.pattern.permute.xlu0 0
    %30 = vperm.xlu0 %29, %v28
    %v31 = vpop.permute.xlu0 %30
    %vm32 = vcmp.eq.s32.totalorder %v31, 1
    %v33 = vperm.slane %v17, 2
    %v34 = vsel %vm32, %v33, %v26
    %vm35 = vcmp.eq.s32.totalorder %v16, 3
    %v36 = vsel %vm35, 1, 0
    %37 = vset.pattern.permute.xlu0 0
    %38 = vperm.xlu0 %37, %v36
    %v39 = vpop.permute.xlu0 %38
    %vm40 = vcmp.eq.s32.totalorder %v39, 1
    %v41 = vperm.slane %v17, 3
    %v42 = vsel %vm40, %v41, %v34
    %vm43 = vcmp.eq.s32.totalorder %v16, 4
    %v44 = vsel %vm43, 1, 0
    %45 = vset.pattern.permute.xlu0 0
    %46 = vperm.xlu0 %45, %v44
    %v47 = vpop.permute.xlu0 %46
    %vm48 = vcmp.eq.s32.totalorder %v47, 1
    %v49 = vperm.slane %v17, 4
    %v50 = vsel %vm48, %v49, %v42
    %vm51 = vcmp.eq.s32.totalorder %v16, 5
    %v52 = vsel %vm51, 1, 0
    %53 = vset.pattern.permute.xlu0 0
    %54 = vperm.xlu0 %53, %v52
    %v55 = vpop.permute.xlu0 %54
    %vm56 = vcmp.eq.s32.totalorder %v55, 1
    %v57 = vperm.slane %v17, 5
    %v58 = vsel %vm56, %v57, %v50
    %vm59 = vcmp.eq.s32.totalorder %v16, 6
    %v60 = vsel %vm59, 1, 0
    %61 = vset.pattern.permute.xlu0 0
    %62 = vperm.xlu0 %61, %v60
    %v63 = vpop.permute.xlu0 %62
    %vm64 = vcmp.eq.s32.totalorder %v63, 1
    %v65 = vperm.slane %v17, 6
    %v66 = vsel %vm64, %v65, %v58
    %vm67 = vcmp.eq.s32.totalorder %v16, 7
    %v68 = vsel %vm67, 1, 0
    %69 = vset.pattern.permute.xlu0 0
    %70 = vperm.xlu0 %69, %v68
    %v71 = vpop.permute.xlu0 %70
    %vm72 = vcmp.eq.s32.totalorder %v71, 1
    %v73 = vperm.slane %v17, 7
    %v74 = vsel %vm72, %v73, %v66
    %vm75 = vcmask 261120
    %76 = vst.msk [vmem:[#allocation2] sm:$0xff] %vm75, %v74
    // Predicated region
    $region10: #{tpu_custom_call.1} parent=1 // pred_check
      _
    $region11: #{tpu_custom_call.1} parent=1 // pred_check_branch
      %78 = sbr.rel (0) target = $region13
    $region12: #{tpu_custom_call.1} parent=1 // pred_region
      %80 = vsyncadd [#allocation3], 0
      %s82 = sshll.u32 [#allocation2], 4
      %s83 = int_to_ptr.vmem [resolvable:$true] %s82
      %s84 = sshll.u32 %s2, 4
      %s85 = int_to_ptr.hbm [resolvable:$true] %s84
      %87 = dma.vmem_to_hbm [thread:$0]  %s83, 128, %s85, [#allocation3]
    $region13: #{tpu_custom_call.1} parent=1 // pred_fallthru
      _
    // Predicated region
    $region14: #{tpu_custom_call.1} parent=1 // pred_check
      _
    $region15: #{tpu_custom_call.1} parent=1 // pred_check_branch
      %89 = sbr.rel (0) target = $region17
    $region16: #{tpu_custom_call.1} parent=1 // pred_region
      %91 = dma.done [#allocation3], 128
    $region17: #{tpu_custom_call.1} parent=1 // pred_fallthru
      _
    %92 = vsyncpa [#allocation3], 1

</llo_original>
